<compile_context>
chip_gen: v5e
topology: v5e:2x2
jax: 0.10.0
libtpu: 0.0.40
codegen_flags: <defaults>
</compile_context>

<pallas_src>
import functools
import math

import jax
import jax.numpy as jnp
from jax.experimental import pallas as pl
from jax.experimental.pallas import tpu as pltpu


def _pick_tile(t, target=256):
    """Largest tile <= target that divides t and is a multiple of 8 (else t)."""
    if t <= target:
        return t
    for c in range(target, 7, -8):
        if t % c == 0:
            return c
    return t


def _qkv_proj_kernel(q_ref, k_ref, v_ref,
                     wq_ref, bq_ref, wk_ref, bk_ref, wv_ref, bv_ref,
                     qo_ref, ko_ref, vo_ref, *, scale):
    # Blocks: q/k/v (1, tt, D) f32; weights (D, D) bf16; biases (1, D) f32.
    q = q_ref[0].astype(jnp.bfloat16)
    k = k_ref[0].astype(jnp.bfloat16)
    v = v_ref[0].astype(jnp.bfloat16)

    qp = jnp.dot(q, wq_ref[...], preferred_element_type=jnp.float32) + bq_ref[...]
    kp = jnp.dot(k, wk_ref[...], preferred_element_type=jnp.float32) + bk_ref[...]
    vp = jnp.dot(v, wv_ref[...], preferred_element_type=jnp.float32) + bv_ref[...]

    # Fold 1/sqrt(head_dim) into Q here (T x D work) instead of scaling the
    # (T, T) scores per KV tile.
    qo_ref[0] = (qp * scale).astype(qo_ref.dtype)
    ko_ref[0] = kp.astype(ko_ref.dtype)
    vo_ref[0] = vp.astype(vo_ref.dtype)


def _flash_attn_outproj_kernel(q_ref, k_ref, v_ref, wc_ref, bc_ref, o_ref,
                               m_sc, l_sc, acc_sc, *, n_head):
    # q_ref: (1, H, tq, nd), k_ref/v_ref: (1, H, tk, nd)  -- all bf16, Q scaled.
    # wc_ref: (H, nd, D) bf16 per-head output-projection slabs; bc_ref: (1, D).
    # o_ref: (1, tq, D) -- lane-dense final output block.
    ki = pl.program_id(2)

    @pl.when(ki == 0)
    def _():
        m_sc[...] = jnp.full(m_sc.shape, -jnp.inf, dtype=m_sc.dtype)
        l_sc[...] = jnp.zeros(l_sc.shape, dtype=l_sc.dtype)
        acc_sc[...] = jnp.zeros(acc_sc.shape, dtype=acc_sc.dtype)

    q = q_ref[0]          # (H, tq, nd)
    k = k_ref[0]          # (H, tk, nd)
    v = v_ref[0]          # (H, tk, nd)

    # Head-batched, transpose-free QK^T: contract the shared last dim directly.
    s = jnp.einsum("hqd,hkd->hqk", q, k,
                   preferred_element_type=jnp.float32)        # (H, tq, tk)
    # TODO(synk): optional attention mask would be applied to `s` here
    # (the module is specified/tested with mask=None).

    m_prev = m_sc[...]
    m_new = jnp.maximum(m_prev, jnp.max(s, axis=-1, keepdims=True))
    alpha = jnp.exp(m_prev - m_new)
    p = jnp.exp(s - m_new)

    l_sc[...] = alpha * l_sc[...] + jnp.sum(p, axis=-1, keepdims=True)
    acc_sc[...] = alpha * acc_sc[...] + jnp.einsum(
        "hqk,hkd->hqd", p.astype(v.dtype), v,
        preferred_element_type=jnp.float32)                   # (H, tq, nd)
    m_sc[...] = m_new

    @pl.when(ki == pl.num_programs(2) - 1)
    def _():
        # Normalize (EUP reciprocal ~free) and immediately apply the output
        # projection per head: out = sum_h ctx_h @ Wc_h + bc.  The context
        # never leaves VMEM and no head-merge transpose is needed.
        inv_l = pl.reciprocal(l_sc[...], approx=True)
        ctx = (acc_sc[...] * inv_l).astype(jnp.bfloat16)      # (H, tq, nd)
        tq = ctx.shape[1]
        d_model = wc_ref.shape[2]
        out = jnp.zeros((tq, d_model), dtype=jnp.float32)
        for h in range(n_head):                               # static unroll
            out = out + jnp.dot(ctx[h], wc_ref[h],
                                preferred_element_type=jnp.float32)
        o_ref[0] = (out + bc_ref[...]).astype(o_ref.dtype)


def multi_head_attention(q, k, v, params, *, n_head, seq_tile=256):
    """q, k, v: (B, T, D) float32. params: dict of PyTorch-layout weights."""
    B, T, D = q.shape
    assert D % n_head == 0
    nd = D // n_head

    t_tile = _pick_tile(T, seq_tile)
    nt = T // t_tile

    # nn.Linear stores (out, in); pre-transpose to (in, out) and cast to bf16
    # so every matmul feeds the MXU at bf16 peak (f32 accumulation).
    wq_t = params["wq"].T.astype(jnp.bfloat16)
    wk_t = params["wk"].T.astype(jnp.bfloat16)
    wv_t = params["wv"].T.astype(jnp.bfloat16)
    # W_combine^T reshaped to per-head slabs (H, nd, D) so the fused attention
    # kernel consumes the per-head context directly (no merge transpose).
    wc_h = params["wc"].T.reshape(n_head, nd, D).astype(jnp.bfloat16)
    bq = params["bq"].reshape(1, D).astype(jnp.float32)
    bk = params["bk"].reshape(1, D).astype(jnp.float32)
    bv = params["bv"].reshape(1, D).astype(jnp.float32)
    bc = params["bc"].reshape(1, D).astype(jnp.float32)

    seq_spec = pl.BlockSpec((1, t_tile, D), lambda b, t: (b, t, 0))
    # Constant index_map -> weights/biases DMA'd once across the whole grid.
    w_spec = pl.BlockSpec((D, D), lambda b, t: (0, 0))
    b_spec = pl.BlockSpec((1, D), lambda b, t: (0, 0))

    proj_cparams = pltpu.CompilerParams(
        dimension_semantics=("parallel", "parallel"),
        vmem_limit_bytes=48 * 1024 * 1024,   # explicit budget (v7x: 64 MiB/TC)
    )

    # ---- 1) fused Q/K/V projections -----------------------------------------
    qp, kp, vp = pl.pallas_call(
        functools.partial(_qkv_proj_kernel, scale=1.0 / math.sqrt(nd)),
        out_shape=(jax.ShapeDtypeStruct((B, T, D), jnp.bfloat16),
                   jax.ShapeDtypeStruct((B, T, D), jnp.bfloat16),
                   jax.ShapeDtypeStruct((B, T, D), jnp.bfloat16)),
        grid_spec=pltpu.PrefetchScalarGridSpec(
            num_scalar_prefetch=0,
            grid=(B, nt),
            in_specs=[seq_spec, seq_spec, seq_spec,
                      w_spec, b_spec, w_spec, b_spec, w_spec, b_spec],
            out_specs=(seq_spec, seq_spec, seq_spec)),
        compiler_params=proj_cparams,
    )(q, k, v, wq_t, bq, wk_t, bk, wv_t, bv)

    # ---- head split (pure layout plumbing, done in XLA) ----------------------
    def to_heads(x):  # (B, T, D) -> (B, H, T, nd)
        return x.reshape(B, T, n_head, nd).transpose(0, 2, 1, 3)

    qh, kh, vh = to_heads(qp), to_heads(kp), to_heads(vp)

    # ---- 2) flash attention + fused output projection ------------------------
    tq = tk = t_tile
    q_spec = pl.BlockSpec((1, n_head, tq, nd), lambda b, qi, ki: (b, 0, qi, 0))
    kv_spec = pl.BlockSpec((1, n_head, tk, nd), lambda b, qi, ki: (b, 0, ki, 0))
    wc_spec = pl.BlockSpec((n_head, nd, D), lambda b, qi, ki: (0, 0, 0))
    bc_spec = pl.BlockSpec((1, D), lambda b, qi, ki: (0, 0))
    out_spec = pl.BlockSpec((1, tq, D), lambda b, qi, ki: (b, qi, 0))

    out = pl.pallas_call(
        functools.partial(_flash_attn_outproj_kernel, n_head=n_head),
        out_shape=jax.ShapeDtypeStruct((B, T, D), q.dtype),
        grid_spec=pltpu.PrefetchScalarGridSpec(
            num_scalar_prefetch=0,
            grid=(B, T // tq, T // tk),
            in_specs=[q_spec, kv_spec, kv_spec, wc_spec, bc_spec],
            out_specs=out_spec,
            scratch_shapes=[pltpu.VMEM((n_head, tq, 1), jnp.float32),
                            pltpu.VMEM((n_head, tq, 1), jnp.float32),
                            pltpu.VMEM((n_head, tq, nd), jnp.float32)]),
        compiler_params=pltpu.CompilerParams(
            dimension_semantics=("parallel", "parallel", "arbitrary"),
            vmem_limit_bytes=48 * 1024 * 1024),
    )(qh, kh, vh, wc_h, bc)

    return out


def _reference_mha(q, k, v, params, *, n_head):
    """Pure-JAX f32 reference mirroring the PyTorch forward (mask=None)."""
    B, T, D = q.shape
    nd = D // n_head

    def lin(x, w, b):
        return x @ w.T + b

    qp = lin(q, params["wq"], params["bq"])
    kp = lin(k, params["wk"], params["bk"])
    vp = lin(v, params["wv"], params["bv"])

    def split(x):
        return x.reshape(B, T, n_head, nd).transpose(0, 2, 1, 3)  # (B, H, T, nd)

    qh, kh, vh = split(qp), split(kp), split(vp)
    score = jnp.einsum("bhqd,bhkd->bhqk", qh, kh) / math.sqrt(nd)
    score = jax.nn.softmax(score, axis=-1)
    ctx = jnp.einsum("bhqk,bhkd->bhqd", score, vh)
    ctx = ctx.transpose(0, 2, 1, 3).reshape(B, T, D)
    return lin(ctx, params["wc"], params["bc"])


if __name__ == "__main__":
    B, T, D, H = 2, 8, 32, 4  # batch, time, d_model, n_head

    key = jax.random.PRNGKey(0)
    keys = jax.random.split(key, 12)

    bound = 1.0 / math.sqrt(D)  # mimic nn.Linear default init range
    params = {
        "wq": jax.random.uniform(keys[0], (D, D), jnp.float32, -bound, bound),
        "bq": jax.random.uniform(keys[1], (D,), jnp.float32, -bound, bound),
        "wk": jax.random.uniform(keys[2], (D, D), jnp.float32, -bound, bound),
        "bk": jax.random.uniform(keys[3], (D,), jnp.float32, -bound, bound),
        "wv": jax.random.uniform(keys[4], (D, D), jnp.float32, -bound, bound),
        "bv": jax.random.uniform(keys[5], (D,), jnp.float32, -bound, bound),
        "wc": jax.random.uniform(keys[6], (D, D), jnp.float32, -bound, bound),
        "bc": jax.random.uniform(keys[7], (D,), jnp.float32, -bound, bound),
    }

    q = jax.random.normal(keys[8], (B, T, D), jnp.float32)
    k = jax.random.normal(keys[9], (B, T, D), jnp.float32)
    v = jax.random.normal(keys[10], (B, T, D), jnp.float32)

    out = multi_head_attention(q, k, v, params, n_head=H)
    out = jax.block_until_ready(out)

    ref = _reference_mha(q, k, v, params, n_head=H)
    assert out.shape == (B, T, D)
    # bf16 MXU operands -> looser tolerance than an all-f32 pipeline.
    assert jnp.allclose(out, ref, atol=5e-2, rtol=5e-2), "mismatch vs reference"

    print("KERNEL_OK")
</pallas_src>

<mosaic_0001>
module attributes {stable_mosaic.version = 11 : i64} {
  func.func @_qkv_proj_kernel(%arg0: i32, %arg1: i32, %arg2: memref<1x8x32xf32, #tpu.memory_space<vmem>>, %arg3: memref<1x8x32xf32, #tpu.memory_space<vmem>>, %arg4: memref<1x8x32xf32, #tpu.memory_space<vmem>>, %arg5: memref<32x32xbf16, #tpu.memory_space<vmem>>, %arg6: memref<1x32xf32, #tpu.memory_space<vmem>>, %arg7: memref<32x32xbf16, #tpu.memory_space<vmem>>, %arg8: memref<1x32xf32, #tpu.memory_space<vmem>>, %arg9: memref<32x32xbf16, #tpu.memory_space<vmem>>, %arg10: memref<1x32xf32, #tpu.memory_space<vmem>>, %arg11: memref<1x8x32xbf16, #tpu.memory_space<vmem>>, %arg12: memref<1x8x32xbf16, #tpu.memory_space<vmem>>, %arg13: memref<1x8x32xbf16, #tpu.memory_space<vmem>>) attributes {dimension_semantics = [#tpu.dimension_semantics<parallel>, #tpu.dimension_semantics<parallel>], iteration_bounds = array<i64: 2, 1>, scalar_prefetch = 0 : i64, scratch_operands = 0 : i64, tpu.core_type = #tpu.core_type<tc>, window_params = [{transform_indices = @transform_0, window_bounds = array<i64: 1, 8, 32>}, {transform_indices = @transform_1, window_bounds = array<i64: 1, 8, 32>}, {transform_indices = @transform_2, window_bounds = array<i64: 1, 8, 32>}, {pipeline_mode = #tpu.pipeline_mode<synchronous>, transform_indices = @transform_3, window_bounds = array<i64: 32, 32>}, {pipeline_mode = #tpu.pipeline_mode<synchronous>, transform_indices = @transform_4, window_bounds = array<i64: 1, 32>}, {pipeline_mode = #tpu.pipeline_mode<synchronous>, transform_indices = @transform_5, window_bounds = array<i64: 32, 32>}, {pipeline_mode = #tpu.pipeline_mode<synchronous>, transform_indices = @transform_6, window_bounds = array<i64: 1, 32>}, {pipeline_mode = #tpu.pipeline_mode<synchronous>, transform_indices = @transform_7, window_bounds = array<i64: 32, 32>}, {pipeline_mode = #tpu.pipeline_mode<synchronous>, transform_indices = @transform_8, window_bounds = array<i64: 1, 32>}, {transform_indices = @transform_9, window_bounds = array<i64: 1, 8, 32>}, {transform_indices = @transform_10, window_bounds = array<i64: 1, 8, 32>}, {transform_indices = @transform_11, window_bounds = array<i64: 1, 8, 32>}]} {
    %c0 = arith.constant 0 : index
    %c0_0 = arith.constant 0 : index
    %c0_1 = arith.constant 0 : index
    %0 = vector.load %arg2[%c0, %c0_0, %c0_1] : memref<1x8x32xf32, #tpu.memory_space<vmem>>, vector<1x8x32xf32>
    %1 = vector.shape_cast %0 : vector<1x8x32xf32> to vector<8x32xf32>
    %2 = arith.truncf %1 : vector<8x32xf32> to vector<8x32xbf16>
    %c0_2 = arith.constant 0 : index
    %c0_3 = arith.constant 0 : index
    %c0_4 = arith.constant 0 : index
    %3 = vector.load %arg3[%c0_2, %c0_3, %c0_4] : memref<1x8x32xf32, #tpu.memory_space<vmem>>, vector<1x8x32xf32>
    %4 = vector.shape_cast %3 : vector<1x8x32xf32> to vector<8x32xf32>
    %5 = arith.truncf %4 : vector<8x32xf32> to vector<8x32xbf16>
    %c0_5 = arith.constant 0 : index
    %c0_6 = arith.constant 0 : index
    %c0_7 = arith.constant 0 : index
    %6 = vector.load %arg4[%c0_5, %c0_6, %c0_7] : memref<1x8x32xf32, #tpu.memory_space<vmem>>, vector<1x8x32xf32>
    %7 = vector.shape_cast %6 : vector<1x8x32xf32> to vector<8x32xf32>
    %8 = arith.truncf %7 : vector<8x32xf32> to vector<8x32xbf16>
    %c0_8 = arith.constant 0 : index
    %c0_9 = arith.constant 0 : index
    %9 = vector.load %arg5[%c0_8, %c0_9] : memref<32x32xbf16, #tpu.memory_space<vmem>>, vector<32x32xbf16>
    %cst = arith.constant dense<0.000000e+00> : vector<8x32xf32>
    %10 = tpu.matmul %2, %9, %cst {dimension_numbers = #tpu.dot_dimension_numbers<[1], [0], [0], [1], [0, 0, 1, 1], [], []>} : vector<8x32xbf16>, vector<32x32xbf16>, vector<8x32xf32> -> vector<8x32xf32>
    %c0_10 = arith.constant 0 : index
    %c0_11 = arith.constant 0 : index
    %11 = vector.load %arg6[%c0_10, %c0_11] : memref<1x32xf32, #tpu.memory_space<vmem>>, vector<1x32xf32>
    %12 = vector.broadcast %11 : vector<1x32xf32> to vector<8x32xf32>
    %13 = arith.addf %10, %12 : vector<8x32xf32>
    %c0_12 = arith.constant 0 : index
    %c0_13 = arith.constant 0 : index
    %14 = vector.load %arg7[%c0_12, %c0_13] : memref<32x32xbf16, #tpu.memory_space<vmem>>, vector<32x32xbf16>
    %cst_14 = arith.constant dense<0.000000e+00> : vector<8x32xf32>
    %15 = tpu.matmul %5, %14, %cst_14 {dimension_numbers = #tpu.dot_dimension_numbers<[1], [0], [0], [1], [0, 0, 1, 1], [], []>} : vector<8x32xbf16>, vector<32x32xbf16>, vector<8x32xf32> -> vector<8x32xf32>
    %c0_15 = arith.constant 0 : index
    %c0_16 = arith.constant 0 : index
    %16 = vector.load %arg8[%c0_15, %c0_16] : memref<1x32xf32, #tpu.memory_space<vmem>>, vector<1x32xf32>
    %17 = vector.broadcast %16 : vector<1x32xf32> to vector<8x32xf32>
    %18 = arith.addf %15, %17 : vector<8x32xf32>
    %c0_17 = arith.constant 0 : index
    %c0_18 = arith.constant 0 : index
    %19 = vector.load %arg9[%c0_17, %c0_18] : memref<32x32xbf16, #tpu.memory_space<vmem>>, vector<32x32xbf16>
    %cst_19 = arith.constant dense<0.000000e+00> : vector<8x32xf32>
    %20 = tpu.matmul %8, %19, %cst_19 {dimension_numbers = #tpu.dot_dimension_numbers<[1], [0], [0], [1], [0, 0, 1, 1], [], []>} : vector<8x32xbf16>, vector<32x32xbf16>, vector<8x32xf32> -> vector<8x32xf32>
    %c0_20 = arith.constant 0 : index
    %c0_21 = arith.constant 0 : index
    %21 = vector.load %arg10[%c0_20, %c0_21] : memref<1x32xf32, #tpu.memory_space<vmem>>, vector<1x32xf32>
    %22 = vector.broadcast %21 : vector<1x32xf32> to vector<8x32xf32>
    %23 = arith.addf %20, %22 : vector<8x32xf32>
    %cst_22 = arith.constant 0.353553385 : f32
    %24 = vector.broadcast %cst_22 : f32 to vector<8x32xf32>
    %25 = arith.mulf %13, %24 : vector<8x32xf32>
    %26 = arith.truncf %25 : vector<8x32xf32> to vector<8x32xbf16>
    %c0_23 = arith.constant 0 : index
    %c0_24 = arith.constant 0 : index
    %c0_25 = arith.constant 0 : index
    %27 = vector.load %arg11[%c0_23, %c0_24, %c0_25] : memref<1x8x32xbf16, #tpu.memory_space<vmem>>, vector<1x8x32xbf16>
    %28 = vector.shape_cast %27 : vector<1x8x32xbf16> to vector<8x32xbf16>
    %29 = vector.shape_cast %26 : vector<8x32xbf16> to vector<1x8x32xbf16>
    tpu.vector_store %arg11[%c0_23, %c0_24, %c0_25], %29 {strides = array<i32>} : memref<1x8x32xbf16, #tpu.memory_space<vmem>>, vector<1x8x32xbf16>,
    %30 = arith.truncf %18 : vector<8x32xf32> to vector<8x32xbf16>
    %c0_26 = arith.constant 0 : index
    %c0_27 = arith.constant 0 : index
    %c0_28 = arith.constant 0 : index
    %31 = vector.load %arg12[%c0_26, %c0_27, %c0_28] : memref<1x8x32xbf16, #tpu.memory_space<vmem>>, vector<1x8x32xbf16>
    %32 = vector.shape_cast %31 : vector<1x8x32xbf16> to vector<8x32xbf16>
    %33 = vector.shape_cast %30 : vector<8x32xbf16> to vector<1x8x32xbf16>
    tpu.vector_store %arg12[%c0_26, %c0_27, %c0_28], %33 {strides = array<i32>} : memref<1x8x32xbf16, #tpu.memory_space<vmem>>, vector<1x8x32xbf16>,
    %34 = arith.truncf %23 : vector<8x32xf32> to vector<8x32xbf16>
    %c0_29 = arith.constant 0 : index
    %c0_30 = arith.constant 0 : index
    %c0_31 = arith.constant 0 : index
    %35 = vector.load %arg13[%c0_29, %c0_30, %c0_31] : memref<1x8x32xbf16, #tpu.memory_space<vmem>>, vector<1x8x32xbf16>
    %36 = vector.shape_cast %35 : vector<1x8x32xbf16> to vector<8x32xbf16>
    %37 = vector.shape_cast %34 : vector<8x32xbf16> to vector<1x8x32xbf16>
    tpu.vector_store %arg13[%c0_29, %c0_30, %c0_31], %37 {strides = array<i32>} : memref<1x8x32xbf16, #tpu.memory_space<vmem>>, vector<1x8x32xbf16>,
    return
  }
  func.func @transform_0(%arg0: i32, %arg1: i32) -> (i32, i32, i32) {
    %c0_i32 = arith.constant 0 : i32
    %c0_i32_0 = arith.constant 0 : i32
    return %arg0, %arg1, %c0_i32 : i32, i32, i32
  }
  func.func @transform_1(%arg0: i32, %arg1: i32) -> (i32, i32, i32) {
    %c0_i32 = arith.constant 0 : i32
    %c0_i32_0 = arith.constant 0 : i32
    return %arg0, %arg1, %c0_i32 : i32, i32, i32
  }
  func.func @transform_2(%arg0: i32, %arg1: i32) -> (i32, i32, i32) {
    %c0_i32 = arith.constant 0 : i32
    %c0_i32_0 = arith.constant 0 : i32
    return %arg0, %arg1, %c0_i32 : i32, i32, i32
  }
  func.func @transform_3(%arg0: i32, %arg1: i32) -> (i32, i32) {
    %c0_i32 = arith.constant 0 : i32
    %c0_i32_0 = arith.constant 0 : i32
    %c0_i32_1 = arith.constant 0 : i32
    return %c0_i32, %c0_i32_0 : i32, i32
  }
  func.func @transform_4(%arg0: i32, %arg1: i32) -> (i32, i32) {
    %c0_i32 = arith.constant 0 : i32
    %c0_i32_0 = arith.constant 0 : i32
    %c0_i32_1 = arith.constant 0 : i32
    return %c0_i32, %c0_i32_0 : i32, i32
  }
  func.func @transform_5(%arg0: i32, %arg1: i32) -> (i32, i32) {
    %c0_i32 = arith.constant 0 : i32
    %c0_i32_0 = arith.constant 0 : i32
    %c0_i32_1 = arith.constant 0 : i32
    return %c0_i32, %c0_i32_0 : i32, i32
  }
  func.func @transform_6(%arg0: i32, %arg1: i32) -> (i32, i32) {
    %c0_i32 = arith.constant 0 : i32
    %c0_i32_0 = arith.constant 0 : i32
    %c0_i32_1 = arith.constant 0 : i32
    return %c0_i32, %c0_i32_0 : i32, i32
  }
  func.func @transform_7(%arg0: i32, %arg1: i32) -> (i32, i32) {
    %c0_i32 = arith.constant 0 : i32
    %c0_i32_0 = arith.constant 0 : i32
    %c0_i32_1 = arith.constant 0 : i32
    return %c0_i32, %c0_i32_0 : i32, i32
  }
  func.func @transform_8(%arg0: i32, %arg1: i32) -> (i32, i32) {
    %c0_i32 = arith.constant 0 : i32
    %c0_i32_0 = arith.constant 0 : i32
    %c0_i32_1 = arith.constant 0 : i32
    return %c0_i32, %c0_i32_0 : i32, i32
  }
  func.func @transform_9(%arg0: i32, %arg1: i32) -> (i32, i32, i32) {
    %c0_i32 = arith.constant 0 : i32
    %c0_i32_0 = arith.constant 0 : i32
    return %arg0, %arg1, %c0_i32 : i32, i32, i32
  }
  func.func @transform_10(%arg0: i32, %arg1: i32) -> (i32, i32, i32) {
    %c0_i32 = arith.constant 0 : i32
    %c0_i32_0 = arith.constant 0 : i32
    return %arg0, %arg1, %c0_i32 : i32, i32, i32
  }
  func.func @transform_11(%arg0: i32, %arg1: i32) -> (i32, i32, i32) {
    %c0_i32 = arith.constant 0 : i32
    %c0_i32_0 = arith.constant 0 : i32
    return %arg0, %arg1, %c0_i32 : i32, i32, i32
  }
}

</mosaic_0001>

<llo_original>
// kernel: tpu_custom_call.1
$region0: #{tpu_custom_call.1}
  #allocation0 [shape = 'u32[]', space=smem, size = 0x4, offset = 0x4, fixed_abs, tag = 'smem constant byte address 0x4 - core index']
  #allocation1 [shape = 'u32[72,128]{1,0:T(1,128)}', space=vmem, size = 0x9000, scoped, tag = 'internal scratch']
  %s0 = inlined_call_operand.hbm [shape: f32[2,8,32], index: 0, kind: input, shape index: {}]
  %s1 = inlined_call_operand.hbm [shape: f32[2,8,32], index: 1, kind: input, shape index: {}]
  %s2 = inlined_call_operand.hbm [shape: f32[2,8,32], index: 2, kind: input, shape index: {}]
  %s3 = inlined_call_operand.hbm [shape: bf16[32,32], index: 3, kind: input, shape index: {}]
  %s4 = inlined_call_operand.vmem [shape: f32[1,32], index: 4, kind: input, shape index: {}]
  %s5 = inlined_call_operand.hbm [shape: bf16[32,32], index: 5, kind: input, shape index: {}]
  %s6 = inlined_call_operand.vmem [shape: f32[1,32], index: 6, kind: input, shape index: {}]
  %s7 = inlined_call_operand.hbm [shape: bf16[32,32], index: 7, kind: input, shape index: {}]
  %s8 = inlined_call_operand.vmem [shape: f32[1,32], index: 8, kind: input, shape index: {}]
  %s9 = inlined_call_operand.hbm [shape: bf16[2,8,32], index: 9, kind: output, shape index: {0}]
  %s10 = inlined_call_operand.hbm [shape: bf16[2,8,32], index: 10, kind: output, shape index: {1}]
  %s11 = inlined_call_operand.hbm [shape: bf16[2,8,32], index: 11, kind: output, shape index: {2}]
  %12 = xla_tuple %s9, %s10, %s11
  %s13 = sld [smem:[#allocation0]]
  $region109: #{tpu_custom_call.1} parent=0
    _
  %s15 = ssub.s32 1, %s13
  %s16 = scalar_select 0, %s15, %s13
  $region1: #{tpu_custom_call.1} parent=0
    #allocation2 [shape = 'u8[8192]{0}', space=vmem, size = 0x2000, scoped, tag = 'input window, operand 0']
    #allocation3 [shape = 's32[2]{0}', space=sflag, size = 0x8, scoped, tag = 'scoped memory for tpu_custom_call.1']
    #allocation4 [shape = 's32[2]{0}', space=sflag, size = 0x8, scoped, tag = 'scoped memory for tpu_custom_call.1']
    #allocation5 [shape = 'u8[8192]{0}', space=vmem, size = 0x2000, scoped, tag = 'input window, operand 1']
    #allocation6 [shape = 's32[2]{0}', space=sflag, size = 0x8, scoped, tag = 'scoped memory for tpu_custom_call.1']
    #allocation7 [shape = 'u8[8192]{0}', space=vmem, size = 0x2000, scoped, tag = 'input window, operand 2']
    #allocation8 [shape = 'u8[8192]{0}', space=vmem, size = 0x2000, scoped, tag = 'input window, operand 3, single buffered']
    #allocation9 [shape = 's32[1]{0}', space=sflag, size = 0x4, scoped, tag = 'scoped memory for tpu_custom_call.1']
    #allocation10 [shape = 'u8[8192]{0}', space=vmem, size = 0x2000, scoped, tag = 'input window, operand 5, single buffered']
    #allocation11 [shape = 'u8[8192]{0}', space=vmem, size = 0x2000, scoped, tag = 'input window, operand 7, single buffered']
    #allocation12 [shape = 's32[1]{0}', space=sflag, size = 0x4, scoped, tag = 'scoped memory for tpu_custom_call.1']
    #allocation13 [shape = 'u8[4096]{0}', space=vmem, size = 0x1000, scoped, tag = 'output window, operand 0']
    #allocation14 [shape = 'u8[4096]{0}', space=vmem, size = 0x1000, scoped, tag = 'output window, operand 1']
    #allocation15 [shape = 's32[2]{0}', space=sflag, size = 0x8, scoped, tag = 'scoped memory for tpu_custom_call.1']
    #allocation16 [shape = 'u8[4096]{0}', space=vmem, size = 0x1000, scoped, tag = 'output window, operand 2']
    %17 = vsyncpa [#allocation3], 0
    %s18 = scalar_lea.sflag [#allocation3], 1
    %19 = vsyncpa %s18, 0
    %20 = vsyncpa [#allocation6], 0
    %s21 = scalar_lea.sflag [#allocation6], 1
    %22 = vsyncpa %s21, 0
    %23 = vsyncpa [#allocation9], 0
    %24 = vsyncpa [#allocation12], 0
    %25 = vsyncpa [#allocation4], 0
    %s26 = scalar_lea.sflag [#allocation4], 1
    %27 = vsyncpa %s26, 0
    %28 = vsyncpa [#allocation15], 0
    %s29 = scalar_lea.sflag [#allocation15], 1
    %30 = vsyncpa %s29, 0
    loop: start=0, step=1, limit=4
    $region2: #{tpu_custom_call.1} parent=1 // loop_pre_header
      _
    $region3: #{tpu_custom_call.1} parent=1 // loop_header
      %s32 = sphi 0, %s36
      %p33 = scmp.ge.s32.totalorder %s32, 4
      %s39 = sphi 0, %s51
      %s40 = sphi 0, %s47
      %s41 = sphi 0, %s39
      %s42 = sphi 0, %s40
      %s43 = sphi 0, %s41
      %s44 = sphi 0, %s42
      %s56 = sphi 0, %s58
      %s59 = sphi 0, %s56
      %s60 = sphi 0, %s59
      %s76 = sphi 0, %s60
      %s84 = sphi 0, %s86
      %s87 = sphi 0, %s84
      %s88 = sphi 0, %s87
      %s104 = sphi 0, %s88
      %s112 = sphi 0, %s114
      %s115 = sphi 0, %s112
      %s116 = sphi 0, %s115
      %s132 = sphi 0, %s116
      %s136 = sphi 0, %s136
      %s138 = sphi 0, %s136
      %s139 = sphi 0, %s138
      %s153 = sphi 0, %s139
      %s157 = sphi 0, %s157
      %s159 = sphi 0, %s157
      %s160 = sphi 0, %s159
      %s174 = sphi 0, %s160
      %s178 = sphi 0, %s178
      %s180 = sphi 0, %s178
      %s181 = sphi 0, %s180
      %s195 = sphi 0, %s181
      %s199 = sphi 0, %s199
      %s201 = sphi 0, %s199
      %s202 = sphi 0, %s201
      %s216 = sphi 0, %s202
      %s220 = sphi 0, %s220
      %s222 = sphi 0, %s220
      %s223 = sphi 0, %s222
      %s237 = sphi 0, %s223
      %s241 = sphi 0, %s241
      %s243 = sphi 0, %s241
      %s244 = sphi 0, %s243
      %s258 = sphi 0, %s244
      %s266 = sphi 0, %s268
      %s269 = sphi 0, %s266
      %s270 = sphi 0, %s269
      %s286 = sphi 0, %s270
      %s294 = sphi 0, %s296
      %s297 = sphi 0, %s294
      %s298 = sphi 0, %s297
      %s314 = sphi 0, %s298
      %s322 = sphi 0, %s324
      %s325 = sphi 0, %s322
      %s326 = sphi 0, %s325
      %s342 = sphi 0, %s326
    $region4: #{tpu_custom_call.1} parent=1 // loop_header_branch
      %35 = sbr.rel (%p33) target = $region8
    $region5: #{tpu_custom_call.1} parent=1 // loop_body
      %s37 = ssub.s32 %s32, 1
      %s38 = ssub.s32 %s32, 2
      %s45 = sadd.s32 1, %s40
      %p46 = scmp.ge.s32.totalorder %s45, 1
      %s47 = scalar_select %p46, 0, %s45
      %s48 = sadd.s32 1, %s39
      %s49 = scalar_select %p46, %s48, %s39
      %p50 = scmp.ge.s32.totalorder %s49, 2
      %s51 = scalar_select %p50, 0, %s49
      %s52 = ssub.s32 %s39, %s51
      %s53 = ssub.s32 %s40, %s47
      %s54 = sor.u32 %s52, %s53
      %p55 = scmp.eq.s32.totalorder %s54, 0
      %s57 = sadd.s32 %s56, 1
      %s58 = scalar_select %p55, %s56, %s57
      %p61 = pneg %p55
      %p62 = scmp.eq.s32.totalorder %s32, 1
      %p63 = por %p61, %p62
      %p64 = scmp.ne.s32.totalorder %s56, %s59
      %p65 = scmp.eq.s32.totalorder %s32, 0
      %p66 = por %p64, %p65
      %p67 = scmp.ne.s32.totalorder %s56, %s59
      %p68 = scmp.eq.s32.totalorder %s37, 1
      %p69 = por %p67, %p68
      %p70 = scmp.ne.s32.totalorder %s59, %s60
      %p71 = scmp.eq.s32.totalorder %s37, 0
      %p72 = por %p70, %p71
      %p73 = scmp.ne.s32.totalorder %s59, %s60
      %p74 = scmp.eq.s32.totalorder %s38, 1
      %p75 = por %p73, %p74
      %p77 = scmp.ne.s32.totalorder %s60, %s76
      %p78 = scmp.eq.s32.totalorder %s38, 0
      %p79 = por %p77, %p78
      %s80 = ssub.s32 %s39, %s51
      %s81 = ssub.s32 %s40, %s47
      %s82 = sor.u32 %s80, %s81
      %p83 = scmp.eq.s32.totalorder %s82, 0
      %s85 = sadd.s32 %s84, 1
      %s86 = scalar_select %p83, %s84, %s85
      %p89 = pneg %p83
      %p90 = scmp.eq.s32.totalorder %s32, 1
      %p91 = por %p89, %p90
      %p92 = scmp.ne.s32.totalorder %s84, %s87
      %p93 = scmp.eq.s32.totalorder %s32, 0
      %p94 = por %p92, %p93
      %p95 = scmp.ne.s32.totalorder %s84, %s87
      %p96 = scmp.eq.s32.totalorder %s37, 1
      %p97 = por %p95, %p96
      %p98 = scmp.ne.s32.totalorder %s87, %s88
      %p99 = scmp.eq.s32.totalorder %s37, 0
      %p100 = por %p98, %p99
      %p101 = scmp.ne.s32.totalorder %s87, %s88
      %p102 = scmp.eq.s32.totalorder %s38, 1
      %p103 = por %p101, %p102
      %p105 = scmp.ne.s32.totalorder %s88, %s104
      %p106 = scmp.eq.s32.totalorder %s38, 0
      %p107 = por %p105, %p106
      %s108 = ssub.s32 %s39, %s51
      %s109 = ssub.s32 %s40, %s47
      %s110 = sor.u32 %s108, %s109
      %p111 = scmp.eq.s32.totalorder %s110, 0
      %s113 = sadd.s32 %s112, 1
      %s114 = scalar_select %p111, %s112, %s113
      %p117 = pneg %p111
      %p118 = scmp.eq.s32.totalorder %s32, 1
      %p119 = por %p117, %p118
      %p120 = scmp.ne.s32.totalorder %s112, %s115
      %p121 = scmp.eq.s32.totalorder %s32, 0
      %p122 = por %p120, %p121
      %p123 = scmp.ne.s32.totalorder %s112, %s115
      %p124 = scmp.eq.s32.totalorder %s37, 1
      %p125 = por %p123, %p124
      %p126 = scmp.ne.s32.totalorder %s115, %s116
      %p127 = scmp.eq.s32.totalorder %s37, 0
      %p128 = por %p126, %p127
      %p129 = scmp.ne.s32.totalorder %s115, %s116
      %p130 = scmp.eq.s32.totalorder %s38, 1
      %p131 = por %p129, %p130
      %p133 = scmp.ne.s32.totalorder %s116, %s132
      %p134 = scmp.eq.s32.totalorder %s38, 0
      %p135 = por %p133, %p134
      %s137 = sadd.s32 %s136, 1
      %p140 = scmp.eq.s32.totalorder %s32, 1
      %p141 = scmp.ne.s32.totalorder %s136, %s138
      %p142 = scmp.eq.s32.totalorder %s32, 0
      %p143 = por %p141, %p142
      %p144 = scmp.ne.s32.totalorder %s136, %s138
      %p145 = scmp.eq.s32.totalorder %s37, 1
      %p146 = por %p144, %p145
      %p147 = scmp.ne.s32.totalorder %s138, %s139
      %p148 = scmp.eq.s32.totalorder %s37, 0
      %p149 = por %p147, %p148
      %p150 = scmp.ne.s32.totalorder %s138, %s139
      %p151 = scmp.eq.s32.totalorder %s38, 1
      %p152 = por %p150, %p151
      %p154 = scmp.ne.s32.totalorder %s139, %s153
      %p155 = scmp.eq.s32.totalorder %s38, 0
      %p156 = por %p154, %p155
      %s158 = sadd.s32 %s157, 1
      %p161 = scmp.eq.s32.totalorder %s32, 1
      %p162 = scmp.ne.s32.totalorder %s157, %s159
      %p163 = scmp.eq.s32.totalorder %s32, 0
      %p164 = por %p162, %p163
      %p165 = scmp.ne.s32.totalorder %s157, %s159
      %p166 = scmp.eq.s32.totalorder %s37, 1
      %p167 = por %p165, %p166
      %p168 = scmp.ne.s32.totalorder %s159, %s160
      %p169 = scmp.eq.s32.totalorder %s37, 0
      %p170 = por %p168, %p169
      %p171 = scmp.ne.s32.totalorder %s159, %s160
      %p172 = scmp.eq.s32.totalorder %s38, 1
      %p173 = por %p171, %p172
      %p175 = scmp.ne.s32.totalorder %s160, %s174
      %p176 = scmp.eq.s32.totalorder %s38, 0
      %p177 = por %p175, %p176
      %s179 = sadd.s32 %s178, 1
      %p182 = scmp.eq.s32.totalorder %s32, 1
      %p183 = scmp.ne.s32.totalorder %s178, %s180
      %p184 = scmp.eq.s32.totalorder %s32, 0
      %p185 = por %p183, %p184
      %p186 = scmp.ne.s32.totalorder %s178, %s180
      %p187 = scmp.eq.s32.totalorder %s37, 1
      %p188 = por %p186, %p187
      %p189 = scmp.ne.s32.totalorder %s180, %s181
      %p190 = scmp.eq.s32.totalorder %s37, 0
      %p191 = por %p189, %p190
      %p192 = scmp.ne.s32.totalorder %s180, %s181
      %p193 = scmp.eq.s32.totalorder %s38, 1
      %p194 = por %p192, %p193
      %p196 = scmp.ne.s32.totalorder %s181, %s195
      %p197 = scmp.eq.s32.totalorder %s38, 0
      %p198 = por %p196, %p197
      %s200 = sadd.s32 %s199, 1
      %p203 = scmp.eq.s32.totalorder %s32, 1
      %p204 = scmp.ne.s32.totalorder %s199, %s201
      %p205 = scmp.eq.s32.totalorder %s32, 0
      %p206 = por %p204, %p205
      %p207 = scmp.ne.s32.totalorder %s199, %s201
      %p208 = scmp.eq.s32.totalorder %s37, 1
      %p209 = por %p207, %p208
      %p210 = scmp.ne.s32.totalorder %s201, %s202
      %p211 = scmp.eq.s32.totalorder %s37, 0
      %p212 = por %p210, %p211
      %p213 = scmp.ne.s32.totalorder %s201, %s202
      %p214 = scmp.eq.s32.totalorder %s38, 1
      %p215 = por %p213, %p214
      %p217 = scmp.ne.s32.totalorder %s202, %s216
      %p218 = scmp.eq.s32.totalorder %s38, 0
      %p219 = por %p217, %p218
      %s221 = sadd.s32 %s220, 1
      %p224 = scmp.eq.s32.totalorder %s32, 1
      %p225 = scmp.ne.s32.totalorder %s220, %s222
      %p226 = scmp.eq.s32.totalorder %s32, 0
      %p227 = por %p225, %p226
      %p228 = scmp.ne.s32.totalorder %s220, %s222
      %p229 = scmp.eq.s32.totalorder %s37, 1
      %p230 = por %p228, %p229
      %p231 = scmp.ne.s32.totalorder %s222, %s223
      %p232 = scmp.eq.s32.totalorder %s37, 0
      %p233 = por %p231, %p232
      %p234 = scmp.ne.s32.totalorder %s222, %s223
      %p235 = scmp.eq.s32.totalorder %s38, 1
      %p236 = por %p234, %p235
      %p238 = scmp.ne.s32.totalorder %s223, %s237
      %p239 = scmp.eq.s32.totalorder %s38, 0
      %p240 = por %p238, %p239
      %s242 = sadd.s32 %s241, 1
      %p245 = scmp.eq.s32.totalorder %s32, 1
      %p246 = scmp.ne.s32.totalorder %s241, %s243
      %p247 = scmp.eq.s32.totalorder %s32, 0
      %p248 = por %p246, %p247
      %p249 = scmp.ne.s32.totalorder %s241, %s243
      %p250 = scmp.eq.s32.totalorder %s37, 1
      %p251 = por %p249, %p250
      %p252 = scmp.ne.s32.totalorder %s243, %s244
      %p253 = scmp.eq.s32.totalorder %s37, 0
      %p254 = por %p252, %p253
      %p255 = scmp.ne.s32.totalorder %s243, %s244
      %p256 = scmp.eq.s32.totalorder %s38, 1
      %p257 = por %p255, %p256
      %p259 = scmp.ne.s32.totalorder %s244, %s258
      %p260 = scmp.eq.s32.totalorder %s38, 0
      %p261 = por %p259, %p260
      %s262 = ssub.s32 %s39, %s51
      %s263 = ssub.s32 %s40, %s47
      %s264 = sor.u32 %s262, %s263
      %p265 = scmp.eq.s32.totalorder %s264, 0
      %s267 = sadd.s32 %s266, 1
      %s268 = scalar_select %p265, %s266, %s267
      %p271 = pneg %p265
      %p272 = scmp.eq.s32.totalorder %s32, 1
      %p273 = por %p271, %p272
      %p274 = scmp.ne.s32.totalorder %s266, %s269
      %p275 = scmp.eq.s32.totalorder %s32, 0
      %p276 = por %p274, %p275
      %p277 = scmp.ne.s32.totalorder %s266, %s269
      %p278 = scmp.eq.s32.totalorder %s37, 1
      %p279 = por %p277, %p278
      %p280 = scmp.ne.s32.totalorder %s269, %s270
      %p281 = scmp.eq.s32.totalorder %s37, 0
      %p282 = por %p280, %p281
      %p283 = scmp.ne.s32.totalorder %s269, %s270
      %p284 = scmp.eq.s32.totalorder %s38, 1
      %p285 = por %p283, %p284
      %p287 = scmp.ne.s32.totalorder %s270, %s286
      %p288 = scmp.eq.s32.totalorder %s38, 0
      %p289 = por %p287, %p288
      %s290 = ssub.s32 %s39, %s51
      %s291 = ssub.s32 %s40, %s47
      %s292 = sor.u32 %s290, %s291
      %p293 = scmp.eq.s32.totalorder %s292, 0
      %s295 = sadd.s32 %s294, 1
      %s296 = scalar_select %p293, %s294, %s295
      %p299 = pneg %p293
      %p300 = scmp.eq.s32.totalorder %s32, 1
      %p301 = por %p299, %p300
      %p302 = scmp.ne.s32.totalorder %s294, %s297
      %p303 = scmp.eq.s32.totalorder %s32, 0
      %p304 = por %p302, %p303
      %p305 = scmp.ne.s32.totalorder %s294, %s297
      %p306 = scmp.eq.s32.totalorder %s37, 1
      %p307 = por %p305, %p306
      %p308 = scmp.ne.s32.totalorder %s297, %s298
      %p309 = scmp.eq.s32.totalorder %s37, 0
      %p310 = por %p308, %p309
      %p311 = scmp.ne.s32.totalorder %s297, %s298
      %p312 = scmp.eq.s32.totalorder %s38, 1
      %p313 = por %p311, %p312
      %p315 = scmp.ne.s32.totalorder %s298, %s314
      %p316 = scmp.eq.s32.totalorder %s38, 0
      %p317 = por %p315, %p316
      %s318 = ssub.s32 %s39, %s51
      %s319 = ssub.s32 %s40, %s47
      %s320 = sor.u32 %s318, %s319
      %p321 = scmp.eq.s32.totalorder %s320, 0
      %s323 = sadd.s32 %s322, 1
      %s324 = scalar_select %p321, %s322, %s323
      %p327 = pneg %p321
      %p328 = scmp.eq.s32.totalorder %s32, 1
      %p329 = por %p327, %p328
      %p330 = scmp.ne.s32.totalorder %s322, %s325
      %p331 = scmp.eq.s32.totalorder %s32, 0
      %p332 = por %p330, %p331
      %p333 = scmp.ne.s32.totalorder %s322, %s325
      %p334 = scmp.eq.s32.totalorder %s37, 1
      %p335 = por %p333, %p334
      %p336 = scmp.ne.s32.totalorder %s325, %s326
      %p337 = scmp.eq.s32.totalorder %s37, 0
      %p338 = por %p336, %p337
      %p339 = scmp.ne.s32.totalorder %s325, %s326
      %p340 = scmp.eq.s32.totalorder %s38, 1
      %p341 = por %p339, %p340
      %p343 = scmp.ne.s32.totalorder %s326, %s342
      %p344 = scmp.eq.s32.totalorder %s38, 0
      %p345 = por %p343, %p344
      %p346 = scmp.le.s32.totalorder 1, %s32
      %p347 = scmp.lt.s32.totalorder %s32, 3
      %p348 = pnand %p346, %p347
      %p349 = pneg %p348
      // Predicated region
      $region9: #{tpu_custom_call.1} parent=5 // pred_check
        _
      $region10: #{tpu_custom_call.1} parent=5 // pred_check_branch
        %351 = sbr.rel (%p348) target = $region12
      $region11: #{tpu_custom_call.1} parent=5 // pred_region
        %s352 = ssub.s32 %s32, 1
        // Predicated region
        $region13: #{tpu_custom_call.1} parent=11 // pred_check
          %p353 = pneg %p149
        $region14: #{tpu_custom_call.1} parent=11 // pred_check_branch
          %355 = sbr.rel (%p353) target = $region16
        $region15: #{tpu_custom_call.1} parent=11 // pred_region
          %357 = vsyncadd [#allocation9], 0
          %s358 = sshll.u32 %s3, 4
          %s359 = int_to_ptr.hbm [resolvable:$true] %s358
          %s360 = sshll.u32 [#allocation8], 4
          %s361 = int_to_ptr.vmem [resolvable:$true] %s360
          %366 = dma.hbm_to_vmem [thread:$0]  %s359, 256, %s361, [#allocation9], 64, 64, 4
        $region16: #{tpu_custom_call.1} parent=11 // pred_fallthru
          _
        // Predicated region
        $region17: #{tpu_custom_call.1} parent=11 // pred_check
          %p367 = pneg %p170
        $region18: #{tpu_custom_call.1} parent=11 // pred_check_branch
          %369 = sbr.rel (%p367) target = $region20
        $region19: #{tpu_custom_call.1} parent=11 // pred_region
          _
        $region20: #{tpu_custom_call.1} parent=11 // pred_fallthru
          _
        // Predicated region
        $region21: #{tpu_custom_call.1} parent=11 // pred_check
          %p370 = pneg %p191
        $region22: #{tpu_custom_call.1} parent=11 // pred_check_branch
          %372 = sbr.rel (%p370) target = $region24
        $region23: #{tpu_custom_call.1} parent=11 // pred_region
          %374 = vsyncadd [#allocation9], 0
          %s375 = sshll.u32 %s5, 4
          %s376 = int_to_ptr.hbm [resolvable:$true] %s375
          %s377 = sshll.u32 [#allocation10], 4
          %s378 = int_to_ptr.vmem [resolvable:$true] %s377
          %383 = dma.hbm_to_vmem [thread:$0]  %s376, 256, %s378, [#allocation9], 64, 64, 4
        $region24: #{tpu_custom_call.1} parent=11 // pred_fallthru
          _
        // Predicated region
        $region25: #{tpu_custom_call.1} parent=11 // pred_check
          %p384 = pneg %p212
        $region26: #{tpu_custom_call.1} parent=11 // pred_check_branch
          %386 = sbr.rel (%p384) target = $region28
        $region27: #{tpu_custom_call.1} parent=11 // pred_region
          _
        $region28: #{tpu_custom_call.1} parent=11 // pred_fallthru
          _
        // Predicated region
        $region29: #{tpu_custom_call.1} parent=11 // pred_check
          %p387 = pneg %p233
        $region30: #{tpu_custom_call.1} parent=11 // pred_check_branch
          %389 = sbr.rel (%p387) target = $region32
        $region31: #{tpu_custom_call.1} parent=11 // pred_region
          %391 = vsyncadd [#allocation12], 0
          %s392 = sshll.u32 %s7, 4
          %s393 = int_to_ptr.hbm [resolvable:$true] %s392
          %s394 = sshll.u32 [#allocation11], 4
          %s395 = int_to_ptr.vmem [resolvable:$true] %s394
          %400 = dma.hbm_to_vmem [thread:$0]  %s393, 256, %s395, [#allocation12], 64, 64, 4
        $region32: #{tpu_custom_call.1} parent=11 // pred_fallthru
          _
        // Predicated region
        $region33: #{tpu_custom_call.1} parent=11 // pred_check
          %p401 = pneg %p254
        $region34: #{tpu_custom_call.1} parent=11 // pred_check_branch
          %403 = sbr.rel (%p401) target = $region36
        $region35: #{tpu_custom_call.1} parent=11 // pred_region
          _
        $region36: #{tpu_custom_call.1} parent=11 // pred_fallthru
          _
      $region12: #{tpu_custom_call.1} parent=5 // pred_fallthru
        _
      %p404 = scmp.lt.s32.totalorder %s32, 2
      // Predicated region
      $region37: #{tpu_custom_call.1} parent=5 // pred_check
        %p405 = pneg %p404
      $region38: #{tpu_custom_call.1} parent=5 // pred_check_branch
        %407 = sbr.rel (%p405) target = $region40
      $region39: #{tpu_custom_call.1} parent=5 // pred_region
        // Predicated region
        $region41: #{tpu_custom_call.1} parent=39 // pred_check
          %p408 = pneg %p66
        $region42: #{tpu_custom_call.1} parent=39 // pred_check_branch
          %410 = sbr.rel (%p408) target = $region44
        $region43: #{tpu_custom_call.1} parent=39 // pred_region
          %s411 = sand.u32 %s56, 1
          %s412 = scalar_lea.sflag [#allocation3], %s411
          %s413 = sand.u32 %s56, 1
          %s414 = smul.addr %s413, 8
          %s415 = scalar_lea.vmem [#allocation2], %s414
          %417 = vsyncadd %s412, 0
          %s418 = sadd.s32 %s40, %s39
          %s419 = smul.addr %s418, 8
          %s420 = scalar_lea.hbm %s0, %s419
          %s422 = sshll.u32 %s420, 4
          %s423 = int_to_ptr.hbm [resolvable:$true] %s422
          %s424 = sshll.u32 %s415, 4
          %s425 = int_to_ptr.vmem [resolvable:$true] %s424
          %427 = dma.hbm_to_vmem [thread:$0]  %s423, 128, %s425, %s412
        $region44: #{tpu_custom_call.1} parent=39 // pred_fallthru
          _
        // Predicated region
        $region45: #{tpu_custom_call.1} parent=39 // pred_check
          %p428 = pneg %p94
        $region46: #{tpu_custom_call.1} parent=39 // pred_check_branch
          %430 = sbr.rel (%p428) target = $region48
        $region47: #{tpu_custom_call.1} parent=39 // pred_region
          %s431 = sand.u32 %s32, 1
          %s432 = scalar_lea.sflag [#allocation6], %s431
          %s433 = sand.u32 %s84, 1
          %s434 = smul.addr %s433, 8
          %s435 = scalar_lea.vmem [#allocation5], %s434
          %437 = vsyncadd %s432, 0
          %s438 = sadd.s32 %s40, %s39
          %s439 = smul.addr %s438, 8
          %s440 = scalar_lea.hbm %s1, %s439
          %s442 = sshll.u32 %s440, 4
          %s443 = int_to_ptr.hbm [resolvable:$true] %s442
          %s444 = sshll.u32 %s435, 4
          %s445 = int_to_ptr.vmem [resolvable:$true] %s444
          %447 = dma.hbm_to_vmem [thread:$0]  %s443, 128, %s445, %s432
        $region48: #{tpu_custom_call.1} parent=39 // pred_fallthru
          _
        // Predicated region
        $region49: #{tpu_custom_call.1} parent=39 // pred_check
          %p448 = pneg %p122
        $region50: #{tpu_custom_call.1} parent=39 // pred_check_branch
          %450 = sbr.rel (%p448) target = $region52
        $region51: #{tpu_custom_call.1} parent=39 // pred_region
          %s451 = sand.u32 %s32, 1
          %s452 = scalar_lea.sflag [#allocation6], %s451
          %s453 = sand.u32 %s112, 1
          %s454 = smul.addr %s453, 8
          %s455 = scalar_lea.vmem [#allocation7], %s454
          %457 = vsyncadd %s452, 0
          %s458 = sadd.s32 %s40, %s39
          %s459 = smul.addr %s458, 8
          %s460 = scalar_lea.hbm %s2, %s459
          %s462 = sshll.u32 %s460, 4
          %s463 = int_to_ptr.hbm [resolvable:$true] %s462
          %s464 = sshll.u32 %s455, 4
          %s465 = int_to_ptr.vmem [resolvable:$true] %s464
          %467 = dma.hbm_to_vmem [thread:$0]  %s463, 128, %s465, %s452
        $region52: #{tpu_custom_call.1} parent=39 // pred_fallthru
          _
      $region40: #{tpu_custom_call.1} parent=5 // pred_fallthru
        _
      %p468 = scmp.le.s32.totalorder 1, %s32
      %p469 = scmp.lt.s32.totalorder %s32, 3
      %p470 = pnand %p468, %p469
      %p471 = pneg %p470
      // Predicated region
      $region53: #{tpu_custom_call.1} parent=5 // pred_check
        _
      $region54: #{tpu_custom_call.1} parent=5 // pred_check_branch
        %473 = sbr.rel (%p470) target = $region56
      $region55: #{tpu_custom_call.1} parent=5 // pred_region
        %s474 = ssub.s32 %s32, 1
        %s475 = sand.u32 %s59, 1
        %s476 = scalar_lea.sflag [#allocation3], %s475
        %s477 = sand.u32 %s59, 1
        %s478 = smul.addr %s477, 8
        %s479 = scalar_lea.vmem [#allocation2], %s478
        // Predicated region
        $region57: #{tpu_custom_call.1} parent=55 // pred_check
          %p480 = pneg %p72
        $region58: #{tpu_custom_call.1} parent=55 // pred_check_branch
          %482 = sbr.rel (%p480) target = $region60
        $region59: #{tpu_custom_call.1} parent=55 // pred_region
          %484 = dma.done %s476, 128
        $region60: #{tpu_custom_call.1} parent=55 // pred_fallthru
          _
        %s485 = sand.u32 %s37, 1
        %s486 = scalar_lea.sflag [#allocation6], %s485
        %s487 = sand.u32 %s87, 1
        %s488 = smul.addr %s487, 8
        %s489 = scalar_lea.vmem [#allocation5], %s488
        // Predicated region
        $region61: #{tpu_custom_call.1} parent=55 // pred_check
          %p490 = pneg %p100
        $region62: #{tpu_custom_call.1} parent=55 // pred_check_branch
          %492 = sbr.rel (%p490) target = $region64
        $region63: #{tpu_custom_call.1} parent=55 // pred_region
          %494 = dma.done %s486, 128
        $region64: #{tpu_custom_call.1} parent=55 // pred_fallthru
          _
        %s495 = sand.u32 %s37, 1
        %s496 = scalar_lea.sflag [#allocation6], %s495
        %s497 = sand.u32 %s115, 1
        %s498 = smul.addr %s497, 8
        %s499 = scalar_lea.vmem [#allocation7], %s498
        // Predicated region
        $region65: #{tpu_custom_call.1} parent=55 // pred_check
          %p500 = pneg %p128
        $region66: #{tpu_custom_call.1} parent=55 // pred_check_branch
          %502 = sbr.rel (%p500) target = $region68
        $region67: #{tpu_custom_call.1} parent=55 // pred_region
          %504 = dma.done %s496, 128
        $region68: #{tpu_custom_call.1} parent=55 // pred_fallthru
          _
        // Predicated region
        $region69: #{tpu_custom_call.1} parent=55 // pred_check
          %p505 = pneg %p149
        $region70: #{tpu_custom_call.1} parent=55 // pred_check_branch
          %507 = sbr.rel (%p505) target = $region72
        $region71: #{tpu_custom_call.1} parent=55 // pred_region
          %509 = dma.done [#allocation9], 256
        $region72: #{tpu_custom_call.1} parent=55 // pred_fallthru
          _
        // Predicated region
        $region73: #{tpu_custom_call.1} parent=55 // pred_check
          %p510 = pneg %p191
        $region74: #{tpu_custom_call.1} parent=55 // pred_check_branch
          %512 = sbr.rel (%p510) target = $region76
        $region75: #{tpu_custom_call.1} parent=55 // pred_region
          %514 = dma.done [#allocation9], 256
        $region76: #{tpu_custom_call.1} parent=55 // pred_fallthru
          _
        // Predicated region
        $region77: #{tpu_custom_call.1} parent=55 // pred_check
          %p515 = pneg %p233
        $region78: #{tpu_custom_call.1} parent=55 // pred_check_branch
          %517 = sbr.rel (%p515) target = $region80
        $region79: #{tpu_custom_call.1} parent=55 // pred_region
          %519 = dma.done [#allocation12], 256
        $region80: #{tpu_custom_call.1} parent=55 // pred_fallthru
          _
        %s520 = sand.u32 %s59, 1
        %s521 = scalar_lea.sflag [#allocation3], %s520
        %s522 = sand.u32 %s59, 1
        %s523 = smul.addr %s522, 8
        %s524 = scalar_lea.vmem [#allocation2], %s523
        %p525 = pneg %p72
        %p526 = pneg %p69
        %s527 = sand.u32 %s37, 1
        %s528 = scalar_lea.sflag [#allocation6], %s527
        %s529 = sand.u32 %s87, 1
        %s530 = smul.addr %s529, 8
        %s531 = scalar_lea.vmem [#allocation5], %s530
        %p532 = pneg %p100
        %p533 = pneg %p97
        %s534 = sand.u32 %s37, 1
        %s535 = scalar_lea.sflag [#allocation6], %s534
        %s536 = sand.u32 %s115, 1
        %s537 = smul.addr %s536, 8
        %s538 = scalar_lea.vmem [#allocation7], %s537
        %p539 = pneg %p128
        %p540 = pneg %p125
        %p541 = pneg %p149
        %p542 = pneg %p146
        %p543 = pneg %p170
        %p544 = pneg %p167
        %p545 = pneg %p191
        %p546 = pneg %p188
        %p547 = pneg %p212
        %p548 = pneg %p209
        %p549 = pneg %p233
        %p550 = pneg %p230
        %p551 = pneg %p254
        %p552 = pneg %p251
        %p553 = pneg %p282
        %p554 = pneg %p279
        %s555 = sand.u32 %s269, 1
        %s556 = scalar_lea.sflag [#allocation4], %s555
        %s557 = sand.u32 %s269, 1
        %s558 = smul.addr %s557, 4
        %s559 = scalar_lea.vmem [#allocation13], %s558
        %p560 = pneg %p310
        %p561 = pneg %p307
        %s562 = sand.u32 %s37, 1
        %s563 = scalar_lea.sflag [#allocation15], %s562
        %s564 = sand.u32 %s297, 1
        %s565 = smul.addr %s564, 4
        %s566 = scalar_lea.vmem [#allocation14], %s565
        %p567 = pneg %p338
        %p568 = pneg %p335
        %s569 = sand.u32 %s37, 1
        %s570 = scalar_lea.sflag [#allocation15], %s569
        %s571 = sand.u32 %s325, 1
        %s572 = smul.addr %s571, 4
        %s573 = scalar_lea.vmem [#allocation16], %s572
        %v575 = vld [vmem:[%s479] sm:$0xff]
        %v576 = vpack.c.bf16 %v575, %v575
        %v577 = vld [vmem:[%s489] sm:$0xff]
        %v578 = vpack.c.bf16 %v577, %v577
        %v579 = vld [vmem:[%s499] sm:$0xff]
        %v580 = vpack.c.bf16 %v579, %v579
        %v581 = vld [vmem:[#allocation8] sm:$0xf]
        %v582 = vld [vmem:[#allocation8 + $0x4] sm:$0xf]
        %v583 = vld [vmem:[#allocation8 + $0x8] sm:$0xf]
        %v584 = vld [vmem:[#allocation8 + $0xc] sm:$0xf]
        %v585 = vld [vmem:[%s4] sm:$0x1]
        %v587 = vperm.slane %v585, 0
        %v593 = vunpack.c.l.b16 %v581
        %v594 = vunpack.c.l.b16 %v582
        %v595 = vunpack.c.l.b16 %v583
        %v596 = vunpack.c.l.b16 %v584
        %v597 = vpack.c.b16 %v594, %v593
        %v598 = vpack.c.b16 %v596, %v595
        %vm601 = vcmask 261120
        %v603 = vsel %vm601, %v576, 0
        %605 = vmatpush.bf16.msra.mxu0 0
        %606 = vmatpush.bf16.msra.mxu0 0
        %607 = vmatpush.bf16.msra.mxu0 0
        %608 = vmatpush.bf16.msra.mxu0 0
        %609 = vmatpush.bf16.msra.mxu0 0
        %610 = vmatpush.bf16.msra.mxu0 0
        %611 = vmatpush.bf16.msra.mxu0 %v598
        %612 = vmatpush.bf16.msra.mxu0 %v597
        %613 = vmatmul.bf16.gmra.mxu0 %v603
        %v614 = vpop.f32.mrf.mxu0
        %v615 = vadd.f32 %v587, %v614
        %v616 = vpop.f32.mrf.mxu0
        %617 = vdwg.mxu0
        %v618 = vld [vmem:[#allocation10] sm:$0xf]
        %v619 = vld [vmem:[#allocation10 + $0x4] sm:$0xf]
        %v620 = vld [vmem:[#allocation10 + $0x8] sm:$0xf]
        %v621 = vld [vmem:[#allocation10 + $0xc] sm:$0xf]
        %v622 = vld [vmem:[%s6] sm:$0x1]
        %v624 = vperm.slane %v622, 0
        %v630 = vunpack.c.l.b16 %v618
        %v631 = vunpack.c.l.b16 %v619
        %v632 = vunpack.c.l.b16 %v620
        %v633 = vunpack.c.l.b16 %v621
        %v634 = vpack.c.b16 %v631, %v630
        %v635 = vpack.c.b16 %v633, %v632
        %v639 = vsel %vm601, %v578, 0
        %641 = vmatpush.bf16.msra.mxu0 0
        %642 = vmatpush.bf16.msra.mxu0 0
        %643 = vmatpush.bf16.msra.mxu0 0
        %644 = vmatpush.bf16.msra.mxu0 0
        %645 = vmatpush.bf16.msra.mxu0 0
        %646 = vmatpush.bf16.msra.mxu0 0
        %647 = vmatpush.bf16.msra.mxu0 %v635
        %648 = vmatpush.bf16.msra.mxu0 %v634
        %649 = vmatmul.bf16.gmra.mxu0 %v639
        %v650 = vpop.f32.mrf.mxu0
        %v651 = vadd.f32 %v624, %v650
        %v652 = vpop.f32.mrf.mxu0
        %653 = vdwg.mxu0
        %v654 = vld [vmem:[#allocation11] sm:$0xf]
        %v655 = vld [vmem:[#allocation11 + $0x4] sm:$0xf]
        %v656 = vld [vmem:[#allocation11 + $0x8] sm:$0xf]
        %v657 = vld [vmem:[#allocation11 + $0xc] sm:$0xf]
        %v658 = vld [vmem:[%s8] sm:$0x1]
        %v660 = vperm.slane %v658, 0
        %v666 = vunpack.c.l.b16 %v654
        %v667 = vunpack.c.l.b16 %v655
        %v668 = vunpack.c.l.b16 %v656
        %v669 = vunpack.c.l.b16 %v657
        %v670 = vpack.c.b16 %v667, %v666
        %v671 = vpack.c.b16 %v669, %v668
        %v675 = vsel %vm601, %v580, 0
        %677 = vmatpush.bf16.msra.mxu0 0
        %678 = vmatpush.bf16.msra.mxu0 0
        %679 = vmatpush.bf16.msra.mxu0 0
        %680 = vmatpush.bf16.msra.mxu0 0
        %681 = vmatpush.bf16.msra.mxu0 0
        %682 = vmatpush.bf16.msra.mxu0 0
        %683 = vmatpush.bf16.msra.mxu0 %v671
        %684 = vmatpush.bf16.msra.mxu0 %v670
        %685 = vmatmul.bf16.gmra.mxu0 %v675
        %v686 = vpop.f32.mrf.mxu0
        %v687 = vadd.f32 %v660, %v686
        %v688 = vpop.f32.mrf.mxu0
        %689 = vdwg.mxu0
        %v690 = vmul.f32 %v615, 0.35355338
        %v691 = vpack.c.bf16 %v690, %v690
        %vm692 = vcmask 257024
        %693 = vst.msk [vmem:[%s559] sm:$0xf] %vm692, %v691
        %v694 = vpack.c.bf16 %v651, %v651
        %695 = vst.msk [vmem:[%s566] sm:$0xf] %vm692, %v694
        %v696 = vpack.c.bf16 %v687, %v687
        %697 = vst.msk [vmem:[%s573] sm:$0xf] %vm692, %v696
        %s698 = sand.u32 %s269, 1
        %s699 = scalar_lea.sflag [#allocation4], %s698
        %s700 = sand.u32 %s269, 1
        %s701 = smul.addr %s700, 4
        %s702 = scalar_lea.vmem [#allocation13], %s701
        %s703 = sand.u32 %s37, 1
        %s704 = scalar_lea.sflag [#allocation15], %s703
        %s705 = sand.u32 %s297, 1
        %s706 = smul.addr %s705, 4
        %s707 = scalar_lea.vmem [#allocation14], %s706
        %s708 = sand.u32 %s37, 1
        %s709 = scalar_lea.sflag [#allocation15], %s708
        %s710 = sand.u32 %s325, 1
        %s711 = smul.addr %s710, 4
        %s712 = scalar_lea.vmem [#allocation16], %s711
        // Predicated region
        $region81: #{tpu_custom_call.1} parent=55 // pred_check
          %p713 = pneg %p279
        $region82: #{tpu_custom_call.1} parent=55 // pred_check_branch
          %715 = sbr.rel (%p713) target = $region84
        $region83: #{tpu_custom_call.1} parent=55 // pred_region
          %717 = vsyncadd %s699, 0
          %s718 = sadd.s32 %s42, %s41
          %s719 = smul.addr %s718, 4
          %s720 = scalar_lea.hbm %s9, %s719
          %s722 = sshll.u32 %s702, 4
          %s723 = int_to_ptr.vmem [resolvable:$true] %s722
          %s724 = sshll.u32 %s720, 4
          %s725 = int_to_ptr.hbm [resolvable:$true] %s724
          %727 = dma.vmem_to_hbm [thread:$0]  %s723, 64, %s725, %s699
        $region84: #{tpu_custom_call.1} parent=55 // pred_fallthru
          _
        // Predicated region
        $region85: #{tpu_custom_call.1} parent=55 // pred_check
          %p728 = pneg %p307
        $region86: #{tpu_custom_call.1} parent=55 // pred_check_branch
          %730 = sbr.rel (%p728) target = $region88
        $region87: #{tpu_custom_call.1} parent=55 // pred_region
          %732 = vsyncadd %s704, 0
          %s733 = sadd.s32 %s42, %s41
          %s734 = smul.addr %s733, 4
          %s735 = scalar_lea.hbm %s10, %s734
          %s737 = sshll.u32 %s707, 4
          %s738 = int_to_ptr.vmem [resolvable:$true] %s737
          %s739 = sshll.u32 %s735, 4
          %s740 = int_to_ptr.hbm [resolvable:$true] %s739
          %742 = dma.vmem_to_hbm [thread:$0]  %s738, 64, %s740, %s704
        $region88: #{tpu_custom_call.1} parent=55 // pred_fallthru
          _
        // Predicated region
        $region89: #{tpu_custom_call.1} parent=55 // pred_check
          %p743 = pneg %p335
        $region90: #{tpu_custom_call.1} parent=55 // pred_check_branch
          %745 = sbr.rel (%p743) target = $region92
        $region91: #{tpu_custom_call.1} parent=55 // pred_region
          %747 = vsyncadd %s709, 0
          %s748 = sadd.s32 %s42, %s41
          %s749 = smul.addr %s748, 4
          %s750 = scalar_lea.hbm %s11, %s749
          %s752 = sshll.u32 %s712, 4
          %s753 = int_to_ptr.vmem [resolvable:$true] %s752
          %s754 = sshll.u32 %s750, 4
          %s755 = int_to_ptr.hbm [resolvable:$true] %s754
          %757 = dma.vmem_to_hbm [thread:$0]  %s753, 64, %s755, %s709
        $region92: #{tpu_custom_call.1} parent=55 // pred_fallthru
          _
      $region56: #{tpu_custom_call.1} parent=5 // pred_fallthru
        _
      %p758 = scmp.le.s32.totalorder 2, %s32
      // Predicated region
      $region93: #{tpu_custom_call.1} parent=5 // pred_check
        %p759 = pneg %p758
      $region94: #{tpu_custom_call.1} parent=5 // pred_check_branch
        %761 = sbr.rel (%p759) target = $region96
      $region95: #{tpu_custom_call.1} parent=5 // pred_region
        %s762 = ssub.s32 %s32, 2
        // Predicated region
        $region97: #{tpu_custom_call.1} parent=95 // pred_check
          %p763 = pneg %p285
        $region98: #{tpu_custom_call.1} parent=95 // pred_check_branch
          %765 = sbr.rel (%p763) target = $region100
        $region99: #{tpu_custom_call.1} parent=95 // pred_region
          %s766 = sand.u32 %s270, 1
          %s767 = scalar_lea.sflag [#allocation4], %s766
          %s768 = sand.u32 %s270, 1
          %s769 = smul.addr %s768, 4
          %s770 = scalar_lea.vmem [#allocation13], %s769
          %772 = dma.done %s767, 64
        $region100: #{tpu_custom_call.1} parent=95 // pred_fallthru
          _
        // Predicated region
        $region101: #{tpu_custom_call.1} parent=95 // pred_check
          %p773 = pneg %p313
        $region102: #{tpu_custom_call.1} parent=95 // pred_check_branch
          %775 = sbr.rel (%p773) target = $region104
        $region103: #{tpu_custom_call.1} parent=95 // pred_region
          %s776 = sand.u32 %s38, 1
          %s777 = scalar_lea.sflag [#allocation15], %s776
          %s778 = sand.u32 %s298, 1
          %s779 = smul.addr %s778, 4
          %s780 = scalar_lea.vmem [#allocation14], %s779
          %782 = dma.done %s777, 64
        $region104: #{tpu_custom_call.1} parent=95 // pred_fallthru
          _
        // Predicated region
        $region105: #{tpu_custom_call.1} parent=95 // pred_check
          %p783 = pneg %p341
        $region106: #{tpu_custom_call.1} parent=95 // pred_check_branch
          %785 = sbr.rel (%p783) target = $region108
        $region107: #{tpu_custom_call.1} parent=95 // pred_region
          %s786 = sand.u32 %s38, 1
          %s787 = scalar_lea.sflag [#allocation15], %s786
          %s788 = sand.u32 %s326, 1
          %s789 = smul.addr %s788, 4
          %s790 = scalar_lea.vmem [#allocation16], %s789
          %792 = dma.done %s787, 64
        $region108: #{tpu_custom_call.1} parent=95 // pred_fallthru
          _
      $region96: #{tpu_custom_call.1} parent=5 // pred_fallthru
        _
    $region6: #{tpu_custom_call.1} parent=1 // loop_footer
      %s36 = sadd.s32 1, %s32
    $region7: #{tpu_custom_call.1} parent=1 // loop_footer_branch
      %31 = sbr.rel target = $region3
    $region8: #{tpu_custom_call.1} parent=1 // loop_exit
      _
    %793 = vsyncpa [#allocation3], 1
    %s794 = scalar_lea.sflag [#allocation3], 1
    %795 = vsyncpa %s794, 1
    %796 = vsyncpa [#allocation6], 1
    %s797 = scalar_lea.sflag [#allocation6], 1
    %798 = vsyncpa %s797, 1
    %799 = vsyncpa [#allocation9], 1
    %800 = vsyncpa [#allocation12], 1
    %801 = vsyncpa [#allocation4], 1
    %s802 = scalar_lea.sflag [#allocation4], 1
    %803 = vsyncpa %s802, 1
    %804 = vsyncpa [#allocation15], 1
    %s805 = scalar_lea.sflag [#allocation15], 1
    %806 = vsyncpa %s805, 1

</llo_original>
